<compile_context>
chip_gen: v7x
topology: tpu7x:2x2x1
jax: 0.10.0
libtpu: 0.0.40
codegen_flags: <defaults>
</compile_context>

<pallas_src>
import functools

import jax
import jax.numpy as jnp
from jax.experimental import pallas as pl
from jax.experimental.pallas import tpu as pltpu


# ----------------------------------------------------------------------------
# Fused kernel:
#   grid = (batch_tiles, P_tiles)   (P is the reduction axis, last / "arbitrary")
#   per step:  [TB*TP, Kp] x [Kp, C] MXU matmul + bias + ReLU, masked pooled-sum
#   last step: mean (1/P), fc matmul + bias + ReLU + Dropout(0.5), lane-dense store
# ----------------------------------------------------------------------------
def _encoder_kernel(p_true, inv_p,
                    patches_ref, w_conv_ref, b_conv_ref,
                    w_fc_ref, b_fc_ref, u_ref,
                    o_ref, acc_ref):
    p_idx = pl.program_id(1)

    @pl.when(p_idx == 0)
    def _():
        acc_ref[...] = jnp.zeros_like(acc_ref)

    x = patches_ref[...]                      # [TB, TP, Kp] bf16
    TB, TP, Kp = x.shape
    x2 = x.reshape(TB * TP, Kp)               # flatten -> single 2-D MXU matmul
    y = jnp.dot(x2, w_conv_ref[...],
                preferred_element_type=jnp.float32)          # [TB*TP, C] f32
    y = y + b_conv_ref[...]                   # (1, C) broadcast, no reshape
    y = jnp.maximum(y, 0.0)                   # conv ReLU

    y3 = y.reshape(TB, TP, -1)                # [TB, TP, C]
    # Mask zero-padded patch rows so they contribute exactly 0 to the pool.
    row = p_idx * TP + jax.lax.broadcasted_iota(jnp.int32, (1, TP, 1), 1)
    y3 = jnp.where(row < p_true, y3, 0.0)
    acc_ref[...] += jnp.sum(y3, axis=1)       # [TB, C] running pooled sum

    @pl.when(p_idx == pl.num_programs(1) - 1)
    def _():
        feats = acc_ref[...] * inv_p          # global average pool over TRUE P
        # Fused EncoderCNN head: fc Linear + ReLU + Dropout(p=0.5, training).
        h = jnp.dot(feats, w_fc_ref[...], preferred_element_type=jnp.float32)
        h = jnp.maximum(h + b_fc_ref[...], 0.0)
        keep = u_ref[...] < 0.5               # Bernoulli(keep=0.5)
        o_ref[...] = jnp.where(keep, h * 2.0, 0.0)   # scale kept by 1/(1-p)=2


# ----------------------------------------------------------------------------
# Glue: im2col (pure slicing / reshapes, no compute)
# ----------------------------------------------------------------------------
def im2col(x_nhwc, k=3, stride=2):
    B, H, W, C = x_nhwc.shape
    Ho = (H - k) // stride + 1
    Wo = (W - k) // stride + 1
    cols = []
    for di in range(k):
        for dj in range(k):
            sl = x_nhwc[:, di:di + stride * (Ho - 1) + 1:stride,
                           dj:dj + stride * (Wo - 1) + 1:stride, :]
            cols.append(sl)
    patches = jnp.concatenate(cols, axis=-1)                 # [B, Ho, Wo, k*k*C]
    return patches.reshape(B, Ho * Wo, k * k * C)


# ----------------------------------------------------------------------------
# Wrapper
# ----------------------------------------------------------------------------
def encoder_cnn_forward(imgs_nchw, params, dropout_key, *, tp=64, k_sz=3, stride=2):
    # layout: imgs_nchw is [B, C, H, W] (PyTorch); kernel consumes NHWC-derived patches.
    B = imgs_nchw.shape[0]
    x = jnp.transpose(imgs_nchw, (0, 2, 3, 1)).astype(jnp.float32)     # NHWC
    patches = im2col(x, k=k_sz, stride=stride)                         # [B, P, K] f32
    _, P, K = patches.shape
    C = params["w_conv"].shape[1]
    E = params["w_fc"].shape[1]

    # TPU-friendly padding: contraction K -> mult of 32, P -> mult of tp (mult of 8),
    # output E -> mult of 128 (lane-dense stores; sliced back below).
    Kp = pl.cdiv(K, 32) * 32
    P_pad = pl.cdiv(P, tp) * tp
    Ep = pl.cdiv(E, 128) * 128

    patches_p = jnp.pad(patches, ((0, 0), (0, P_pad - P), (0, Kp - K))
                        ).astype(jnp.bfloat16)                         # bf16 MXU path
    w_conv_p = jnp.pad(params["w_conv"], ((0, Kp - K), (0, 0))).astype(jnp.bfloat16)
    b_conv = params["b_conv"].astype(jnp.float32)                      # [1, C]
    w_fc_p = jnp.pad(params["w_fc"], ((0, 0), (0, Ep - E))).astype(jnp.float32)
    b_fc_p = jnp.pad(params["b_fc"], ((0, 0), (0, Ep - E))).astype(jnp.float32)

    # Dropout uniforms drawn host-side (portable; see TODO at top of file).
    u = jax.random.uniform(dropout_key, (B, Ep), dtype=jnp.float32)

    TB = B                          # one batch tile here; for large B use TB = mult of 8
    grid = (B // TB, P_pad // tp)   # (parallel batch tiles, arbitrary P reduction)
    kernel = functools.partial(_encoder_kernel, P, 1.0 / float(P))

    out = pl.pallas_call(
        kernel,
        out_shape=jax.ShapeDtypeStruct((B, Ep), jnp.float32),
        grid=grid,
        in_specs=[
            pl.BlockSpec((TB, tp, Kp), lambda b, p: (b, p, 0)),   # patches (tiled on P)
            pl.BlockSpec((Kp, C), lambda b, p: (0, 0)),           # w_conv
            pl.BlockSpec((1, C), lambda b, p: (0, 0)),            # b_conv
            pl.BlockSpec((C, Ep), lambda b, p: (0, 0)),           # w_fc
            pl.BlockSpec((1, Ep), lambda b, p: (0, 0)),           # b_fc
            pl.BlockSpec((TB, Ep), lambda b, p: (b, 0)),          # dropout uniforms
        ],
        out_specs=pl.BlockSpec((TB, Ep), lambda b, p: (b, 0)),
        scratch_shapes=[pltpu.VMEM((TB, C), jnp.float32)],        # pooled-sum accumulator
        compiler_params=pltpu.CompilerParams(
            dimension_semantics=("parallel", "arbitrary")),
    )(patches_p, w_conv_p, b_conv, w_fc_p, b_fc_p, u)

    return out[:, :E]


# ----------------------------------------------------------------------------
# Main
# ----------------------------------------------------------------------------
if __name__ == "__main__":
    key = jax.random.PRNGKey(0)
    k_img, k_wc, k_bc, k_wf, k_bf, k_drop = jax.random.split(key, 6)

    B, C_in, H, W = 2, 3, 32, 32        # small stand-in for (3, 299, 299) images
    C_stem = 128                        # stand-in for inception fc.in_features (2048)
    embed_size = 64
    k_sz = 3

    imgs = jax.random.normal(k_img, (B, C_in, H, W), dtype=jnp.float32)

    params = {
        "w_conv": jax.random.normal(k_wc, (k_sz * k_sz * C_in, C_stem),
                                    dtype=jnp.float32) * 0.05,
        "b_conv": jax.random.normal(k_bc, (1, C_stem), dtype=jnp.float32) * 0.01,
        "w_fc": jax.random.normal(k_wf, (C_stem, embed_size),
                                  dtype=jnp.float32) * 0.05,
        "b_fc": jax.random.normal(k_bf, (1, embed_size), dtype=jnp.float32) * 0.01,
    }

    out = encoder_cnn_forward(imgs, params, k_drop)
    out = jax.block_until_ready(out)
    assert out.shape == (B, embed_size) and out.dtype == jnp.float32

    # Correctness check against a pure-JAX reference using the same bf16 matmul
    # inputs / f32 accumulation (pre-dropout).
    x_nhwc = jnp.transpose(imgs, (0, 2, 3, 1))
    patches = im2col(x_nhwc, k=k_sz, stride=2)                       # [B, P, K]
    P = patches.shape[1]
    pb = patches.astype(jnp.bfloat16)
    wb = params["w_conv"].astype(jnp.bfloat16)
    conv = jax.lax.dot_general(pb, wb, (((2,), (0,)), ((), ())),
                               preferred_element_type=jnp.float32)   # [B, P, C]
    conv = jnp.maximum(conv + params["b_conv"], 0.0)
    feats_ref = jnp.sum(conv, axis=1) * (1.0 / float(P))
    head_ref = jnp.maximum(feats_ref @ params["w_fc"] + params["b_fc"], 0.0)

    # Every output element must be either dropped (0) or ~2x the ReLU'd fc output.
    ok = jnp.all(jnp.isclose(out, 0.0, atol=1e-6)
                 | jnp.isclose(out, 2.0 * head_ref, rtol=1e-3, atol=1e-5))
    assert bool(ok), "dropout/relu/fc mismatch vs reference"
    assert bool(jnp.all(jnp.isfinite(out)))

    print("KERNEL_OK")
</pallas_src>

<mosaic_0001>
module attributes {stable_mosaic.version = 11 : i64} {
  func.func @_encoder_kernel(%arg0: i32, %arg1: i32, %arg2: memref<2x64x32xbf16, #tpu.memory_space<vmem>>, %arg3: memref<32x128xbf16, #tpu.memory_space<vmem>>, %arg4: memref<1x128xf32, #tpu.memory_space<vmem>>, %arg5: memref<128x128xf32, #tpu.memory_space<vmem>>, %arg6: memref<1x128xf32, #tpu.memory_space<vmem>>, %arg7: memref<2x128xf32, #tpu.memory_space<vmem>>, %arg8: memref<2x128xf32, #tpu.memory_space<vmem>>, %arg9: memref<2x128xf32, #tpu.memory_space<vmem>>) attributes {dimension_semantics = [#tpu.dimension_semantics<parallel>, #tpu.dimension_semantics<arbitrary>], iteration_bounds = array<i64: 1, 4>, scalar_prefetch = 0 : i64, scratch_operands = 1 : i64, tpu.core_type = #tpu.core_type<tc>, window_params = [{transform_indices = @transform_0, window_bounds = array<i64: 2, 64, 32>}, {pipeline_mode = #tpu.pipeline_mode<synchronous>, transform_indices = @transform_1, window_bounds = array<i64: 32, 128>}, {pipeline_mode = #tpu.pipeline_mode<synchronous>, transform_indices = @transform_2, window_bounds = array<i64: 1, 128>}, {pipeline_mode = #tpu.pipeline_mode<synchronous>, transform_indices = @transform_3, window_bounds = array<i64: 128, 128>}, {pipeline_mode = #tpu.pipeline_mode<synchronous>, transform_indices = @transform_4, window_bounds = array<i64: 1, 128>}, {transform_indices = @transform_5, window_bounds = array<i64: 2, 128>}, {transform_indices = @transform_6, window_bounds = array<i64: 2, 128>}]} {
    %c0_i32 = arith.constant 0 : i32
    %0 = arith.cmpi eq, %arg1, %c0_i32 : i32
    %1 = arith.extui %0 : i1 to i32
    %c0_i32_0 = arith.constant 0 : i32
    %2 = arith.cmpi ne, %1, %c0_i32_0 : i32
    scf.if %2 {
      %cst_15 = arith.constant 0.000000e+00 : f32
      %30 = vector.broadcast %cst_15 : f32 to vector<2x128xf32>
      %c0_16 = arith.constant 0 : index
      %c0_17 = arith.constant 0 : index
      %31 = vector.load %arg9[%c0_16, %c0_17] : memref<2x128xf32, #tpu.memory_space<vmem>>, vector<2x128xf32>
      tpu.vector_store %arg9[%c0_16, %c0_17], %30 {strides = array<i32>} : memref<2x128xf32, #tpu.memory_space<vmem>>, vector<2x128xf32>,
    } else {
    }
    %c0 = arith.constant 0 : index
    %c0_1 = arith.constant 0 : index
    %c0_2 = arith.constant 0 : index
    %3 = vector.load %arg2[%c0, %c0_1, %c0_2] : memref<2x64x32xbf16, #tpu.memory_space<vmem>>, vector<2x64x32xbf16>
    %4 = vector.shape_cast %3 : vector<2x64x32xbf16> to vector<128x32xbf16>
    %c0_3 = arith.constant 0 : index
    %c0_4 = arith.constant 0 : index
    %5 = vector.load %arg3[%c0_3, %c0_4] : memref<32x128xbf16, #tpu.memory_space<vmem>>, vector<32x128xbf16>
    %cst = arith.constant dense<0.000000e+00> : vector<128x128xf32>
    %6 = tpu.matmul %4, %5, %cst {dimension_numbers = #tpu.dot_dimension_numbers<[1], [0], [0], [1], [0, 0, 1, 1], [], []>} : vector<128x32xbf16>, vector<32x128xbf16>, vector<128x128xf32> -> vector<128x128xf32>
    %c0_5 = arith.constant 0 : index
    %c0_6 = arith.constant 0 : index
    %7 = vector.load %arg4[%c0_5, %c0_6] : memref<1x128xf32, #tpu.memory_space<vmem>>, vector<1x128xf32>
    %8 = vector.broadcast %7 : vector<1x128xf32> to vector<128x128xf32>
    %9 = arith.addf %6, %8 : vector<128x128xf32>
    %cst_7 = arith.constant 0.000000e+00 : f32
    %10 = vector.broadcast %cst_7 : f32 to vector<128x128xf32>
    %11 = arith.maximumf %9, %10 : vector<128x128xf32>
    %12 = vector.shape_cast %11 : vector<128x128xf32> to vector<2x64x128xf32>
    %c64_i32 = arith.constant 64 : i32
    %13 = arith.muli %arg1, %c64_i32 : i32
    %14 = tpu.iota {dimensions = array<i32: 1>} : vector<1x64x1xi32>
    %15 = vector.broadcast %13 : i32 to vector<1x64x1xi32>
    %16 = arith.addi %15, %14 : vector<1x64x1xi32>
    %c225_i32 = arith.constant 225 : i32
    %17 = vector.broadcast %c225_i32 : i32 to vector<1x64x1xi32>
    %18 = arith.cmpi slt, %16, %17 : vector<1x64x1xi32>
    %cst_8 = arith.constant 0.000000e+00 : f32
    %19 = vector.shape_cast %18 : vector<1x64x1xi1> to vector<1x64x1xi1>
    %20 = vector.broadcast %19 : vector<1x64x1xi1> to vector<2x64x128xi1>
    %21 = vector.broadcast %cst_8 : f32 to vector<2x64x128xf32>
    %22 = arith.select %20, %12, %21 : vector<2x64x128xi1>, vector<2x64x128xf32>
    %c0_9 = arith.constant 0 : index
    %c0_10 = arith.constant 0 : index
    %23 = vector.load %arg9[%c0_9, %c0_10] : memref<2x128xf32, #tpu.memory_space<vmem>>, vector<2x128xf32>
    %cst_11 = arith.constant dense<0.000000e+00> : vector<2x128xf32>
    %24 = vector.multi_reduction <add>, %22, %cst_11 [1] : vector<2x64x128xf32> to vector<2x128xf32>
    %25 = arith.addf %23, %24 : vector<2x128xf32>
    %c0_12 = arith.constant 0 : index
    %c0_13 = arith.constant 0 : index
    %26 = vector.load %arg9[%c0_12, %c0_13] : memref<2x128xf32, #tpu.memory_space<vmem>>, vector<2x128xf32>
    tpu.vector_store %arg9[%c0_12, %c0_13], %25 {strides = array<i32>} : memref<2x128xf32, #tpu.memory_space<vmem>>, vector<2x128xf32>,
    %c3_i32 = arith.constant 3 : i32
    %27 = arith.cmpi eq, %arg1, %c3_i32 : i32
    %28 = arith.extui %27 : i1 to i32
    %c0_i32_14 = arith.constant 0 : i32
    %29 = arith.cmpi ne, %28, %c0_i32_14 : i32
    scf.if %29 {
      %c0_15 = arith.constant 0 : index
      %c0_16 = arith.constant 0 : index
      %30 = vector.load %arg9[%c0_15, %c0_16] : memref<2x128xf32, #tpu.memory_space<vmem>>, vector<2x128xf32>
      %cst_17 = arith.constant 0.00444444455 : f32
      %31 = vector.broadcast %cst_17 : f32 to vector<2x128xf32>
      %32 = arith.mulf %30, %31 : vector<2x128xf32>
      %c0_18 = arith.constant 0 : index
      %c0_19 = arith.constant 0 : index
      %33 = vector.load %arg5[%c0_18, %c0_19] : memref<128x128xf32, #tpu.memory_space<vmem>>, vector<128x128xf32>
      %cst_20 = arith.constant dense<0.000000e+00> : vector<2x128xf32>
      %34 = tpu.matmul %32, %33, %cst_20 {dimension_numbers = #tpu.dot_dimension_numbers<[1], [0], [0], [1], [0, 0, 1, 1], [], []>} : vector<2x128xf32>, vector<128x128xf32>, vector<2x128xf32> -> vector<2x128xf32>
      %c0_21 = arith.constant 0 : index
      %c0_22 = arith.constant 0 : index
      %35 = vector.load %arg6[%c0_21, %c0_22] : memref<1x128xf32, #tpu.memory_space<vmem>>, vector<1x128xf32>
      %36 = vector.broadcast %35 : vector<1x128xf32> to vector<2x128xf32>
      %37 = arith.addf %34, %36 : vector<2x128xf32>
      %cst_23 = arith.constant 0.000000e+00 : f32
      %38 = vector.broadcast %cst_23 : f32 to vector<2x128xf32>
      %39 = arith.maximumf %37, %38 : vector<2x128xf32>
      %c0_24 = arith.constant 0 : index
      %c0_25 = arith.constant 0 : index
      %40 = vector.load %arg7[%c0_24, %c0_25] : memref<2x128xf32, #tpu.memory_space<vmem>>, vector<2x128xf32>
      %cst_26 = arith.constant 5.000000e-01 : f32
      %41 = vector.broadcast %cst_26 : f32 to vector<2x128xf32>
      %42 = arith.cmpf olt, %40, %41 : vector<2x128xf32>
      %cst_27 = arith.constant 2.000000e+00 : f32
      %43 = vector.broadcast %cst_27 : f32 to vector<2x128xf32>
      %44 = arith.mulf %39, %43 : vector<2x128xf32>
      %cst_28 = arith.constant 0.000000e+00 : f32
      %45 = vector.broadcast %cst_28 : f32 to vector<2x128xf32>
      %46 = arith.select %42, %44, %45 : vector<2x128xi1>, vector<2x128xf32>
      %c0_29 = arith.constant 0 : index
      %c0_30 = arith.constant 0 : index
      %47 = vector.load %arg8[%c0_29, %c0_30] : memref<2x128xf32, #tpu.memory_space<vmem>>, vector<2x128xf32>
      tpu.vector_store %arg8[%c0_29, %c0_30], %46 {strides = array<i32>} : memref<2x128xf32, #tpu.memory_space<vmem>>, vector<2x128xf32>,
    } else {
    }
    return
  }
  func.func @transform_0(%arg0: i32, %arg1: i32) -> (i32, i32, i32) {
    %c0_i32 = arith.constant 0 : i32
    %c0_i32_0 = arith.constant 0 : i32
    return %arg0, %arg1, %c0_i32 : i32, i32, i32
  }
  func.func @transform_1(%arg0: i32, %arg1: i32) -> (i32, i32) {
    %c0_i32 = arith.constant 0 : i32
    %c0_i32_0 = arith.constant 0 : i32
    %c0_i32_1 = arith.constant 0 : i32
    return %c0_i32, %c0_i32_0 : i32, i32
  }
  func.func @transform_2(%arg0: i32, %arg1: i32) -> (i32, i32) {
    %c0_i32 = arith.constant 0 : i32
    %c0_i32_0 = arith.constant 0 : i32
    %c0_i32_1 = arith.constant 0 : i32
    return %c0_i32, %c0_i32_0 : i32, i32
  }
  func.func @transform_3(%arg0: i32, %arg1: i32) -> (i32, i32) {
    %c0_i32 = arith.constant 0 : i32
    %c0_i32_0 = arith.constant 0 : i32
    %c0_i32_1 = arith.constant 0 : i32
    return %c0_i32, %c0_i32_0 : i32, i32
  }
  func.func @transform_4(%arg0: i32, %arg1: i32) -> (i32, i32) {
    %c0_i32 = arith.constant 0 : i32
    %c0_i32_0 = arith.constant 0 : i32
    %c0_i32_1 = arith.constant 0 : i32
    return %c0_i32, %c0_i32_0 : i32, i32
  }
  func.func @transform_5(%arg0: i32, %arg1: i32) -> (i32, i32) {
    %c0_i32 = arith.constant 0 : i32
    %c0_i32_0 = arith.constant 0 : i32
    return %arg0, %c0_i32 : i32, i32
  }
  func.func @transform_6(%arg0: i32, %arg1: i32) -> (i32, i32) {
    %c0_i32 = arith.constant 0 : i32
    %c0_i32_0 = arith.constant 0 : i32
    return %arg0, %c0_i32 : i32, i32
  }
}

</mosaic_0001>

<llo_original>
// kernel: tpu_custom_call.1
$region0: #{tpu_custom_call.1}
  #allocation0 [shape = 'u32[]', space=smem, size = 0x4, offset = 0x4, fixed_abs, tag = 'smem constant byte address 0x4 - core index']
  #allocation1 [shape = 'u32[144,128]{1,0:T(1,128)}', space=vmem, size = 0x12000, scoped, tag = 'internal scratch']
  #allocation2 [shape = 'f32[2,128]{1,0:T(2,128)}', space=vmem, size = 0x400, scoped, tag = 'scratch operand']
  %s0 = inlined_call_operand.vmem [shape: bf16[2,256,32], index: 0, kind: input, shape index: {}]
  %s1 = inlined_call_operand.vmem [shape: bf16[32,128], index: 1, kind: input, shape index: {}]
  %s2 = inlined_call_operand.vmem [shape: f32[1,128], index: 2, kind: input, shape index: {}]
  %s3 = inlined_call_operand.vmem [shape: f32[128,128], index: 3, kind: input, shape index: {}]
  %s4 = inlined_call_operand.vmem [shape: f32[1,128], index: 4, kind: input, shape index: {}]
  %s5 = inlined_call_operand.vmem [shape: f32[2,128], index: 5, kind: input, shape index: {}]
  %s6 = inlined_call_operand.hbm [shape: f32[2,128], index: 6, kind: output, shape index: {}]
  %s7 = sld [smem:[#allocation0]]
  $region106: #{tpu_custom_call.1} parent=0
    _
  %s9 = ssub.s32 1, %s7
  %s10 = scalar_select 0, %s9, %s7
  $region1: #{tpu_custom_call.1} parent=0
    #allocation3 [shape = 'u8[65536]{0}', space=vmem, size = 0x10000, scoped, tag = 'input window, operand 0']
    #allocation4 [shape = 'u8[1024]{0}', space=vmem, size = 0x400, scoped, tag = 'output window, operand 0, single buffered']
    #allocation5 [shape = 's32[2]{0}', space=sflag, size = 0x8, scoped, tag = 'scoped memory for tpu_custom_call.1']
    %11 = vsyncpa [#allocation5], 0
    loop: start=0, step=1, limit=6
    $region2: #{tpu_custom_call.1} parent=1 // loop_pre_header
      _
    $region3: #{tpu_custom_call.1} parent=1 // loop_header
      %s13 = sphi 0, %s17
      %p14 = scmp.ge.s32.totalorder %s13, 6
      %s20 = sphi 0, %s32
      %s21 = sphi 0, %s28
      %s22 = sphi 0, %s20
      %s23 = sphi 0, %s21
      %s24 = sphi 0, %s22
      %s25 = sphi 0, %s23
      %s37 = sphi 0, %s39
      %s40 = sphi 0, %s37
      %s41 = sphi 0, %s40
      %s57 = sphi 0, %s41
      %s61 = sphi 0, %s61
      %s63 = sphi 0, %s61
      %s64 = sphi 0, %s63
      %s78 = sphi 0, %s64
      %s82 = sphi 0, %s82
      %s84 = sphi 0, %s82
      %s85 = sphi 0, %s84
      %s99 = sphi 0, %s85
      %s103 = sphi 0, %s103
      %s105 = sphi 0, %s103
      %s106 = sphi 0, %s105
      %s120 = sphi 0, %s106
      %s124 = sphi 0, %s124
      %s126 = sphi 0, %s124
      %s127 = sphi 0, %s126
      %s141 = sphi 0, %s127
      %s147 = sphi 0, %s149
      %s150 = sphi 0, %s147
      %s151 = sphi 0, %s150
      %s167 = sphi 0, %s151
      %s173 = sphi 0, %s175
      %s176 = sphi 0, %s173
      %s177 = sphi 0, %s176
      %s193 = sphi 0, %s177
    $region4: #{tpu_custom_call.1} parent=1 // loop_header_branch
      %16 = sbr.rel (%p14) target = $region8
    $region5: #{tpu_custom_call.1} parent=1 // loop_body
      %s18 = ssub.s32 %s13, 1
      %s19 = ssub.s32 %s13, 2
      %s26 = sadd.s32 1, %s21
      %p27 = scmp.ge.s32.totalorder %s26, 4
      %s28 = scalar_select %p27, 0, %s26
      %s29 = sadd.s32 1, %s20
      %s30 = scalar_select %p27, %s29, %s20
      %p31 = scmp.ge.s32.totalorder %s30, 1
      %s32 = scalar_select %p31, 0, %s30
      %s33 = ssub.s32 %s20, %s32
      %s34 = ssub.s32 %s21, %s28
      %s35 = sor.u32 %s33, %s34
      %p36 = scmp.eq.s32.totalorder %s35, 0
      %s38 = sadd.s32 %s37, 1
      %s39 = scalar_select %p36, %s37, %s38
      %p42 = pneg %p36
      %p43 = scmp.eq.s32.totalorder %s13, 3
      %p44 = por %p42, %p43
      %p45 = scmp.ne.s32.totalorder %s37, %s40
      %p46 = scmp.eq.s32.totalorder %s13, 0
      %p47 = por %p45, %p46
      %p48 = scmp.ne.s32.totalorder %s37, %s40
      %p49 = scmp.eq.s32.totalorder %s18, 3
      %p50 = por %p48, %p49
      %p51 = scmp.ne.s32.totalorder %s40, %s41
      %p52 = scmp.eq.s32.totalorder %s18, 0
      %p53 = por %p51, %p52
      %p54 = scmp.ne.s32.totalorder %s40, %s41
      %p55 = scmp.eq.s32.totalorder %s19, 3
      %p56 = por %p54, %p55
      %p58 = scmp.ne.s32.totalorder %s41, %s57
      %p59 = scmp.eq.s32.totalorder %s19, 0
      %p60 = por %p58, %p59
      %s62 = sadd.s32 %s61, 1
      %p65 = scmp.eq.s32.totalorder %s13, 3
      %p66 = scmp.ne.s32.totalorder %s61, %s63
      %p67 = scmp.eq.s32.totalorder %s13, 0
      %p68 = por %p66, %p67
      %p69 = scmp.ne.s32.totalorder %s61, %s63
      %p70 = scmp.eq.s32.totalorder %s18, 3
      %p71 = por %p69, %p70
      %p72 = scmp.ne.s32.totalorder %s63, %s64
      %p73 = scmp.eq.s32.totalorder %s18, 0
      %p74 = por %p72, %p73
      %p75 = scmp.ne.s32.totalorder %s63, %s64
      %p76 = scmp.eq.s32.totalorder %s19, 3
      %p77 = por %p75, %p76
      %p79 = scmp.ne.s32.totalorder %s64, %s78
      %p80 = scmp.eq.s32.totalorder %s19, 0
      %p81 = por %p79, %p80
      %s83 = sadd.s32 %s82, 1
      %p86 = scmp.eq.s32.totalorder %s13, 3
      %p87 = scmp.ne.s32.totalorder %s82, %s84
      %p88 = scmp.eq.s32.totalorder %s13, 0
      %p89 = por %p87, %p88
      %p90 = scmp.ne.s32.totalorder %s82, %s84
      %p91 = scmp.eq.s32.totalorder %s18, 3
      %p92 = por %p90, %p91
      %p93 = scmp.ne.s32.totalorder %s84, %s85
      %p94 = scmp.eq.s32.totalorder %s18, 0
      %p95 = por %p93, %p94
      %p96 = scmp.ne.s32.totalorder %s84, %s85
      %p97 = scmp.eq.s32.totalorder %s19, 3
      %p98 = por %p96, %p97
      %p100 = scmp.ne.s32.totalorder %s85, %s99
      %p101 = scmp.eq.s32.totalorder %s19, 0
      %p102 = por %p100, %p101
      %s104 = sadd.s32 %s103, 1
      %p107 = scmp.eq.s32.totalorder %s13, 3
      %p108 = scmp.ne.s32.totalorder %s103, %s105
      %p109 = scmp.eq.s32.totalorder %s13, 0
      %p110 = por %p108, %p109
      %p111 = scmp.ne.s32.totalorder %s103, %s105
      %p112 = scmp.eq.s32.totalorder %s18, 3
      %p113 = por %p111, %p112
      %p114 = scmp.ne.s32.totalorder %s105, %s106
      %p115 = scmp.eq.s32.totalorder %s18, 0
      %p116 = por %p114, %p115
      %p117 = scmp.ne.s32.totalorder %s105, %s106
      %p118 = scmp.eq.s32.totalorder %s19, 3
      %p119 = por %p117, %p118
      %p121 = scmp.ne.s32.totalorder %s106, %s120
      %p122 = scmp.eq.s32.totalorder %s19, 0
      %p123 = por %p121, %p122
      %s125 = sadd.s32 %s124, 1
      %p128 = scmp.eq.s32.totalorder %s13, 3
      %p129 = scmp.ne.s32.totalorder %s124, %s126
      %p130 = scmp.eq.s32.totalorder %s13, 0
      %p131 = por %p129, %p130
      %p132 = scmp.ne.s32.totalorder %s124, %s126
      %p133 = scmp.eq.s32.totalorder %s18, 3
      %p134 = por %p132, %p133
      %p135 = scmp.ne.s32.totalorder %s126, %s127
      %p136 = scmp.eq.s32.totalorder %s18, 0
      %p137 = por %p135, %p136
      %p138 = scmp.ne.s32.totalorder %s126, %s127
      %p139 = scmp.eq.s32.totalorder %s19, 3
      %p140 = por %p138, %p139
      %p142 = scmp.ne.s32.totalorder %s127, %s141
      %p143 = scmp.eq.s32.totalorder %s19, 0
      %p144 = por %p142, %p143
      %s145 = ssub.s32 %s20, %s32
      %p146 = scmp.eq.s32.totalorder %s145, 0
      %s148 = sadd.s32 %s147, 1
      %s149 = scalar_select %p146, %s147, %s148
      %p152 = pneg %p146
      %p153 = scmp.eq.s32.totalorder %s13, 3
      %p154 = por %p152, %p153
      %p155 = scmp.ne.s32.totalorder %s147, %s150
      %p156 = scmp.eq.s32.totalorder %s13, 0
      %p157 = por %p155, %p156
      %p158 = scmp.ne.s32.totalorder %s147, %s150
      %p159 = scmp.eq.s32.totalorder %s18, 3
      %p160 = por %p158, %p159
      %p161 = scmp.ne.s32.totalorder %s150, %s151
      %p162 = scmp.eq.s32.totalorder %s18, 0
      %p163 = por %p161, %p162
      %p164 = scmp.ne.s32.totalorder %s150, %s151
      %p165 = scmp.eq.s32.totalorder %s19, 3
      %p166 = por %p164, %p165
      %p168 = scmp.ne.s32.totalorder %s151, %s167
      %p169 = scmp.eq.s32.totalorder %s19, 0
      %p170 = por %p168, %p169
      %s171 = ssub.s32 %s20, %s32
      %p172 = scmp.eq.s32.totalorder %s171, 0
      %s174 = sadd.s32 %s173, 1
      %s175 = scalar_select %p172, %s173, %s174
      %p178 = pneg %p172
      %p179 = scmp.eq.s32.totalorder %s13, 3
      %p180 = por %p178, %p179
      %p181 = scmp.ne.s32.totalorder %s173, %s176
      %p182 = scmp.eq.s32.totalorder %s13, 0
      %p183 = por %p181, %p182
      %p184 = scmp.ne.s32.totalorder %s173, %s176
      %p185 = scmp.eq.s32.totalorder %s18, 3
      %p186 = por %p184, %p185
      %p187 = scmp.ne.s32.totalorder %s176, %s177
      %p188 = scmp.eq.s32.totalorder %s18, 0
      %p189 = por %p187, %p188
      %p190 = scmp.ne.s32.totalorder %s176, %s177
      %p191 = scmp.eq.s32.totalorder %s19, 3
      %p192 = por %p190, %p191
      %p194 = scmp.ne.s32.totalorder %s177, %s193
      %p195 = scmp.eq.s32.totalorder %s19, 0
      %p196 = por %p194, %p195
      %p197 = scmp.le.s32.totalorder 1, %s13
      %p198 = scmp.lt.s32.totalorder %s13, 5
      %p199 = pnand %p197, %p198
      %p200 = pneg %p199
      // Predicated region
      $region9: #{tpu_custom_call.1} parent=5 // pred_check
        _
      $region10: #{tpu_custom_call.1} parent=5 // pred_check_branch
        %202 = sbr.rel (%p199) target = $region12
      $region11: #{tpu_custom_call.1} parent=5 // pred_region
        %s203 = ssub.s32 %s13, 1
        // Predicated region
        $region13: #{tpu_custom_call.1} parent=11 // pred_check
          %p204 = pneg %p74
        $region14: #{tpu_custom_call.1} parent=11 // pred_check_branch
          %206 = sbr.rel (%p204) target = $region16
        $region15: #{tpu_custom_call.1} parent=11 // pred_region
          _
        $region16: #{tpu_custom_call.1} parent=11 // pred_fallthru
          _
        // Predicated region
        $region17: #{tpu_custom_call.1} parent=11 // pred_check
          %p207 = pneg %p95
        $region18: #{tpu_custom_call.1} parent=11 // pred_check_branch
          %209 = sbr.rel (%p207) target = $region20
        $region19: #{tpu_custom_call.1} parent=11 // pred_region
          _
        $region20: #{tpu_custom_call.1} parent=11 // pred_fallthru
          _
        // Predicated region
        $region21: #{tpu_custom_call.1} parent=11 // pred_check
          %p210 = pneg %p116
        $region22: #{tpu_custom_call.1} parent=11 // pred_check_branch
          %212 = sbr.rel (%p210) target = $region24
        $region23: #{tpu_custom_call.1} parent=11 // pred_region
          _
        $region24: #{tpu_custom_call.1} parent=11 // pred_fallthru
          _
        // Predicated region
        $region25: #{tpu_custom_call.1} parent=11 // pred_check
          %p213 = pneg %p137
        $region26: #{tpu_custom_call.1} parent=11 // pred_check_branch
          %215 = sbr.rel (%p213) target = $region28
        $region27: #{tpu_custom_call.1} parent=11 // pred_region
          _
        $region28: #{tpu_custom_call.1} parent=11 // pred_fallthru
          _
        // Predicated region
        $region29: #{tpu_custom_call.1} parent=11 // pred_check
          %p216 = pneg %p163
        $region30: #{tpu_custom_call.1} parent=11 // pred_check_branch
          %218 = sbr.rel (%p216) target = $region32
        $region31: #{tpu_custom_call.1} parent=11 // pred_region
          %p219 = scmp.lt.s32.totalorder %s22, 0
          %s220 = scalar_select %p219, %s22, 0
          %s221 = smul.addr %s220, 2
          %s222 = scalar_lea.vmem %s5, %s221
        $region32: #{tpu_custom_call.1} parent=11 // pred_fallthru
          _
      $region12: #{tpu_custom_call.1} parent=5 // pred_fallthru
        _
      %p223 = scmp.lt.s32.totalorder %s13, 4
      // Predicated region
      $region33: #{tpu_custom_call.1} parent=5 // pred_check
        %p224 = pneg %p223
      $region34: #{tpu_custom_call.1} parent=5 // pred_check_branch
        %226 = sbr.rel (%p224) target = $region36
      $region35: #{tpu_custom_call.1} parent=5 // pred_region
        // Predicated region
        $region37: #{tpu_custom_call.1} parent=35 // pred_check
          %p227 = pneg %p47
        $region38: #{tpu_custom_call.1} parent=35 // pred_check_branch
          %229 = sbr.rel (%p227) target = $region40
        $region39: #{tpu_custom_call.1} parent=35 // pred_region
          %s230 = sand.u32 %s37, 1
          %s231 = sand.u32 %s37, 1
          %s232 = smul.addr %s231, 64
          %s233 = scalar_lea.vmem [#allocation3], %s232
          %s234 = smul.u32 2, %s20
          %s235 = smul.u32 8, %s21
          %s236 = smul.addr %s234, 32
          %s237 = sadd.s32 %s235, %s236
          %s238 = smul.addr %s237, 4
          %s239 = scalar_lea.vmem %s0, %s238
          // Predicated region
          $region41: #{tpu_custom_call.1} parent=39 // pred_check
            _
          $region42: #{tpu_custom_call.1} parent=39 // pred_check_branch
            %241 = sbr.rel (0) target = $region44
          $region43: #{tpu_custom_call.1} parent=39 // pred_region
            // Predicated region
            $region45: #{tpu_custom_call.1} parent=43 // pred_check
              _
            $region46: #{tpu_custom_call.1} parent=43 // pred_check_branch
              %243 = sbr.rel target = $region48
            $region47: #{tpu_custom_call.1} parent=43 // pred_region
              // Predicated region
              $region60: #{tpu_custom_call.1} parent=47 // pred_check
                _
              $region61: #{tpu_custom_call.1} parent=47 // pred_check_branch
                %288 = sbr.rel (0) target = $region63
              $region62: #{tpu_custom_call.1} parent=47 // pred_region
                loop: start=0, step=1, limit=1
                $region64: #{tpu_custom_call.1} parent=62 // loop_pre_header
                  _
                $region65: #{tpu_custom_call.1} parent=62 // loop_header
                  %s290 = sphi 0, %s294
                  %p291 = scmp.ge.s32.totalorder %s290, 1
                  %s295 = sphi %s239, %s239
                  %s296 = sphi %s233, %s233
                $region66: #{tpu_custom_call.1} parent=62 // loop_header_branch
                  %293 = sbr.rel (%p291) target = $region70
                $region67: #{tpu_custom_call.1} parent=62 // loop_body
                  _
                $region68: #{tpu_custom_call.1} parent=62 // loop_footer
                  %s294 = sadd.s32 1, %s290
                $region69: #{tpu_custom_call.1} parent=62 // loop_footer_branch
                  %289 = sbr.rel target = $region65
                $region70: #{tpu_custom_call.1} parent=62 // loop_exit
                  _
                loop: start=0, step=1, limit=1
                $region71: #{tpu_custom_call.1} parent=62 // loop_pre_header
                  _
                $region72: #{tpu_custom_call.1} parent=62 // loop_header
                  %s299 = sphi 0, %s303
                  %p300 = scmp.ge.s32.totalorder %s299, 1
                  %s304 = sphi %s239, %s239
                  %s305 = sphi %s233, %s233
                $region73: #{tpu_custom_call.1} parent=62 // loop_header_branch
                  %302 = sbr.rel (%p300) target = $region77
                $region74: #{tpu_custom_call.1} parent=62 // loop_body
                  %v306 = vld [vmem:[%s304] sm:$0xf]
                  %307 = vst [vmem:[%s305] sm:$0xf] %v306
                  %v308 = vld [vmem:[%s304 + $0x4] sm:$0xf]
                  %309 = vst [vmem:[%s305 + $0x4] sm:$0xf] %v308
                  %v310 = vld [vmem:[%s304 + $0x8] sm:$0xf]
                  %311 = vst [vmem:[%s305 + $0x8] sm:$0xf] %v310
                  %v312 = vld [vmem:[%s304 + $0xc] sm:$0xf]
                  %313 = vst [vmem:[%s305 + $0xc] sm:$0xf] %v312
                  %v314 = vld [vmem:[%s304 + $0x10] sm:$0xf]
                  %315 = vst [vmem:[%s305 + $0x10] sm:$0xf] %v314
                  %v316 = vld [vmem:[%s304 + $0x14] sm:$0xf]
                  %317 = vst [vmem:[%s305 + $0x14] sm:$0xf] %v316
                  %v318 = vld [vmem:[%s304 + $0x18] sm:$0xf]
                  %319 = vst [vmem:[%s305 + $0x18] sm:$0xf] %v318
                  %v320 = vld [vmem:[%s304 + $0x1c] sm:$0xf]
                  %321 = vst [vmem:[%s305 + $0x1c] sm:$0xf] %v320
                  %v322 = vld [vmem:[%s304 + $0x80] sm:$0xf]
                  %323 = vst [vmem:[%s305 + $0x20] sm:$0xf] %v322
                  %v324 = vld [vmem:[%s304 + $0x84] sm:$0xf]
                  %325 = vst [vmem:[%s305 + $0x24] sm:$0xf] %v324
                  %v326 = vld [vmem:[%s304 + $0x88] sm:$0xf]
                  %327 = vst [vmem:[%s305 + $0x28] sm:$0xf] %v326
                  %v328 = vld [vmem:[%s304 + $0x8c] sm:$0xf]
                  %329 = vst [vmem:[%s305 + $0x2c] sm:$0xf] %v328
                  %v330 = vld [vmem:[%s304 + $0x90] sm:$0xf]
                  %331 = vst [vmem:[%s305 + $0x30] sm:$0xf] %v330
                  %v332 = vld [vmem:[%s304 + $0x94] sm:$0xf]
                  %333 = vst [vmem:[%s305 + $0x34] sm:$0xf] %v332
                  %v334 = vld [vmem:[%s304 + $0x98] sm:$0xf]
                  %335 = vst [vmem:[%s305 + $0x38] sm:$0xf] %v334
                  %v336 = vld [vmem:[%s304 + $0x9c] sm:$0xf]
                  %337 = vst [vmem:[%s305 + $0x3c] sm:$0xf] %v336
                $region75: #{tpu_custom_call.1} parent=62 // loop_footer
                  %s303 = sadd.s32 1, %s299
                $region76: #{tpu_custom_call.1} parent=62 // loop_footer_branch
                  %298 = sbr.rel target = $region72
                $region77: #{tpu_custom_call.1} parent=62 // loop_exit
                  _
              $region63: #{tpu_custom_call.1} parent=47 // pred_fallthru
                _
            $region48: #{tpu_custom_call.1} parent=43 // pred_fallthru
              _
            // Predicated region
            $region49: #{tpu_custom_call.1} parent=43 // pred_check
              _
            $region50: #{tpu_custom_call.1} parent=43 // pred_check_branch
              %245 = sbr.rel (0) target = $region52
            $region51: #{tpu_custom_call.1} parent=43 // pred_region
              loop: start=0, step=1, limit=1
              $region53: #{tpu_custom_call.1} parent=51 // loop_pre_header
                _
              $region54: #{tpu_custom_call.1} parent=51 // loop_header
                %s248 = sphi 0, %s252
                %p249 = scmp.ge.s32.totalorder %s248, 1
                %s253 = sphi %s239, %s239
                %s254 = sphi %s233, %s233
              $region55: #{tpu_custom_call.1} parent=51 // loop_header_branch
                %251 = sbr.rel (%p249) target = $region59
              $region56: #{tpu_custom_call.1} parent=51 // loop_body
                %v255 = vld [vmem:[%s253] sm:$0xf]
                %256 = vst [vmem:[%s254] sm:$0xf] %v255
                %v257 = vld [vmem:[%s253 + $0x4] sm:$0xf]
                %258 = vst [vmem:[%s254 + $0x4] sm:$0xf] %v257
                %v259 = vld [vmem:[%s253 + $0x8] sm:$0xf]
                %260 = vst [vmem:[%s254 + $0x8] sm:$0xf] %v259
                %v261 = vld [vmem:[%s253 + $0xc] sm:$0xf]
                %262 = vst [vmem:[%s254 + $0xc] sm:$0xf] %v261
                %v263 = vld [vmem:[%s253 + $0x10] sm:$0xf]
                %264 = vst [vmem:[%s254 + $0x10] sm:$0xf] %v263
                %v265 = vld [vmem:[%s253 + $0x14] sm:$0xf]
                %266 = vst [vmem:[%s254 + $0x14] sm:$0xf] %v265
                %v267 = vld [vmem:[%s253 + $0x18] sm:$0xf]
                %268 = vst [vmem:[%s254 + $0x18] sm:$0xf] %v267
                %v269 = vld [vmem:[%s253 + $0x1c] sm:$0xf]
                %270 = vst [vmem:[%s254 + $0x1c] sm:$0xf] %v269
                %v271 = vld [vmem:[%s253 + $0x80] sm:$0xf]
                %272 = vst [vmem:[%s254 + $0x20] sm:$0xf] %v271
                %v273 = vld [vmem:[%s253 + $0x84] sm:$0xf]
                %274 = vst [vmem:[%s254 + $0x24] sm:$0xf] %v273
                %v275 = vld [vmem:[%s253 + $0x88] sm:$0xf]
                %276 = vst [vmem:[%s254 + $0x28] sm:$0xf] %v275
                %v277 = vld [vmem:[%s253 + $0x8c] sm:$0xf]
                %278 = vst [vmem:[%s254 + $0x2c] sm:$0xf] %v277
                %v279 = vld [vmem:[%s253 + $0x90] sm:$0xf]
                %280 = vst [vmem:[%s254 + $0x30] sm:$0xf] %v279
                %v281 = vld [vmem:[%s253 + $0x94] sm:$0xf]
                %282 = vst [vmem:[%s254 + $0x34] sm:$0xf] %v281
                %v283 = vld [vmem:[%s253 + $0x98] sm:$0xf]
                %284 = vst [vmem:[%s254 + $0x38] sm:$0xf] %v283
                %v285 = vld [vmem:[%s253 + $0x9c] sm:$0xf]
                %286 = vst [vmem:[%s254 + $0x3c] sm:$0xf] %v285
              $region57: #{tpu_custom_call.1} parent=51 // loop_footer
                %s252 = sadd.s32 1, %s248
              $region58: #{tpu_custom_call.1} parent=51 // loop_footer_branch
                %247 = sbr.rel target = $region54
              $region59: #{tpu_custom_call.1} parent=51 // loop_exit
                _
            $region52: #{tpu_custom_call.1} parent=43 // pred_fallthru
              _
          $region44: #{tpu_custom_call.1} parent=39 // pred_fallthru
            _
          %338 = vnop
        $region40: #{tpu_custom_call.1} parent=35 // pred_fallthru
          _
      $region36: #{tpu_custom_call.1} parent=5 // pred_fallthru
        _
      %p339 = scmp.le.s32.totalorder 1, %s13
      %p340 = scmp.lt.s32.totalorder %s13, 5
      %p341 = pnand %p339, %p340
      %p342 = pneg %p341
      // Predicated region
      $region78: #{tpu_custom_call.1} parent=5 // pred_check
        _
      $region79: #{tpu_custom_call.1} parent=5 // pred_check_branch
        %344 = sbr.rel (%p341) target = $region81
      $region80: #{tpu_custom_call.1} parent=5 // pred_region
        %s345 = ssub.s32 %s13, 1
        %s346 = sand.u32 %s40, 1
        %s347 = sand.u32 %s40, 1
        %s348 = smul.addr %s347, 64
        %s349 = scalar_lea.vmem [#allocation3], %s348
        // Predicated region
        $region82: #{tpu_custom_call.1} parent=80 // pred_check
          %p350 = pneg %p53
        $region83: #{tpu_custom_call.1} parent=80 // pred_check_branch
          %352 = sbr.rel (%p350) target = $region85
        $region84: #{tpu_custom_call.1} parent=80 // pred_region
          _
        $region85: #{tpu_custom_call.1} parent=80 // pred_fallthru
          _
        %s353 = sand.u32 %s40, 1
        %s354 = sand.u32 %s40, 1
        %s355 = smul.addr %s354, 64
        %s356 = scalar_lea.vmem [#allocation3], %s355
        %p357 = pneg %p53
        %p358 = pneg %p50
        %p359 = pneg %p74
        %p360 = pneg %p71
        %p361 = pneg %p95
        %p362 = pneg %p92
        %p363 = pneg %p116
        %p364 = pneg %p113
        %p365 = pneg %p137
        %p366 = pneg %p134
        %p367 = scmp.lt.s32.totalorder %s22, 0
        %s368 = scalar_select %p367, %s22, 0
        %s369 = smul.addr %s368, 2
        %s370 = scalar_lea.vmem %s5, %s369
        %p371 = pneg %p163
        %p372 = pneg %p160
        %p373 = pneg %p189
        %p374 = pneg %p186
        %s375 = smul.u32 2, %s22
        %s376 = smul.u32 8, %s23
        %p377 = scmp.lt.s32.totalorder %s22, 0
        %s378 = scalar_select %p377, %s22, 0
        %s379 = smul.addr %s378, 2
        %s380 = scalar_lea.vmem %s5, %s379
        %p382 = scmp.eq.s32.totalorder %s23, 0
        // Predicated region
        $region86: #{tpu_custom_call.1} parent=80 // pred_check
          %p383 = pneg %p382
        $region87: #{tpu_custom_call.1} parent=80 // pred_check_branch
          %385 = sbr.rel (%p383) target = $region89
        $region88: #{tpu_custom_call.1} parent=80 // pred_region
          %386 = vst [vmem:[#allocation2] sm:$0x3] 0.0
        $region89: #{tpu_custom_call.1} parent=80 // pred_fallthru
          _
        %v387 = vld [vmem:[%s349] sm:$0xf]
        %v388 = vld [vmem:[%s349 + $0x4] sm:$0xf]
        %v389 = vld [vmem:[%s349 + $0x8] sm:$0xf]
        %v390 = vld [vmem:[%s349 + $0xc] sm:$0xf]
        %v391 = vld [vmem:[%s349 + $0x10] sm:$0xf]
        %v392 = vld [vmem:[%s349 + $0x14] sm:$0xf]
        %v393 = vld [vmem:[%s349 + $0x18] sm:$0xf]
        %v394 = vld [vmem:[%s349 + $0x1c] sm:$0xf]
        %v395 = vld [vmem:[%s349 + $0x20] sm:$0xf]
        %v396 = vld [vmem:[%s349 + $0x24] sm:$0xf]
        %v397 = vld [vmem:[%s349 + $0x28] sm:$0xf]
        %v398 = vld [vmem:[%s349 + $0x2c] sm:$0xf]
        %v399 = vld [vmem:[%s349 + $0x30] sm:$0xf]
        %v400 = vld [vmem:[%s349 + $0x34] sm:$0xf]
        %v401 = vld [vmem:[%s349 + $0x38] sm:$0xf]
        %v402 = vld [vmem:[%s349 + $0x3c] sm:$0xf]
        %v403 = vld [vmem:[%s1] sm:$0xf]
        %v404 = vld [vmem:[%s1 + $0x4] sm:$0xf]
        %v405 = vld [vmem:[%s1 + $0x8] sm:$0xf]
        %v406 = vld [vmem:[%s1 + $0xc] sm:$0xf]
        %v407 = vld [vmem:[%s2] sm:$0x1]
        %v409 = vlaneseq
        %v410 = vshrl.u32 %v409, 7
        %v411 = vsub.s32 0, %v410
        %v412 = vrot.slane %v407, %v411
        %v430 = vunpack.c.l.b16 %v387
        %v431 = vunpack.c.l.b16 %v388
        %v432 = vunpack.c.l.b16 %v389
        %v433 = vunpack.c.l.b16 %v390
        %v434 = vunpack.c.l.b16 %v391
        %v435 = vunpack.c.l.b16 %v392
        %v436 = vunpack.c.l.b16 %v393
        %v437 = vunpack.c.l.b16 %v394
        %v438 = vunpack.c.l.b16 %v395
        %v439 = vunpack.c.l.b16 %v396
        %v440 = vunpack.c.l.b16 %v397
        %v441 = vunpack.c.l.b16 %v398
        %v442 = vunpack.c.l.b16 %v399
        %v443 = vunpack.c.l.b16 %v400
        %v444 = vunpack.c.l.b16 %v401
        %v445 = vunpack.c.l.b16 %v402
        %v446 = vpack.c.b16 %v431, %v430
        %v447 = vpack.c.b16 %v433, %v432
        %v448 = vpack.c.b16 %v435, %v434
        %v449 = vpack.c.b16 %v437, %v436
        %v450 = vpack.c.b16 %v439, %v438
        %v451 = vpack.c.b16 %v441, %v440
        %v452 = vpack.c.b16 %v443, %v442
        %v453 = vpack.c.b16 %v445, %v444
        %v458 = vunpack.c.l.b16 %v403
        %v459 = vunpack.c.l.b16 %v404
        %v460 = vunpack.c.l.b16 %v405
        %v461 = vunpack.c.l.b16 %v406
        %v462 = vpack.c.b16 %v459, %v458
        %v463 = vpack.c.b16 %v461, %v460
        %vm466 = vcmask 261120
        %v468 = vsel %vm466, %v446, 0
        %v471 = vsel %vm466, %v447, 0
        %v474 = vsel %vm466, %v448, 0
        %v477 = vsel %vm466, %v449, 0
        %v480 = vsel %vm466, %v450, 0
        %v483 = vsel %vm466, %v451, 0
        %v486 = vsel %vm466, %v452, 0
        %v489 = vsel %vm466, %v453, 0
        %491 = vmatprep.subr.bf16.mxu0 0
        %492 = vmatpush1.bf16.msra.mxu0 %v462
        %493 = vmatprep.subr.bf16.mxu0 0
        %494 = vmatpush1.bf16.msra.mxu0 %v463
        %495 = vmatprep.subr.bf16.mxu0 0
        %496 = vmatpush1.bf16.msra.mxu0 0
        %497 = vmatprep.subr.bf16.mxu0 0
        %498 = vmatpush1.bf16.msra.mxu0 0
        %499 = vmatprep.subr.bf16.mxu0 0
        %500 = vmatpush1.bf16.msra.mxu0 0
        %501 = vmatprep.subr.bf16.mxu0 0
        %502 = vmatpush1.bf16.msra.mxu0 0
        %503 = vmatprep.subr.bf16.mxu0 0
        %504 = vmatpush1.bf16.msra.mxu0 0
        %505 = vmatprep.subr.bf16.mxu0 0
        %506 = vmatpush1.bf16.msra.mxu0 0
        %507 = vmatprep.subr.bf16.mxu0 0
        %508 = vmatpush1.bf16.msra.mxu0 0
        %509 = vmatprep.subr.bf16.mxu0 0
        %510 = vmatpush1.bf16.msra.mxu0 0
        %511 = vmatprep.subr.bf16.mxu0 0
        %512 = vmatpush1.bf16.msra.mxu0 0
        %513 = vmatprep.subr.bf16.mxu0 0
        %514 = vmatpush1.bf16.msra.mxu0 0
        %515 = vmatprep.subr.bf16.mxu0 0
        %516 = vmatpush1.bf16.msra.mxu0 0
        %517 = vmatprep.subr.bf16.mxu0 0
        %518 = vmatpush1.bf16.msra.mxu0 0
        %519 = vmatprep.subr.bf16.mxu0 0
        %520 = vmatpush1.bf16.msra.mxu0 0
        %521 = vmatprep.subr.bf16.mxu0 0
        %522 = vmatpush1.bf16.msra.mxu0 0
        %523 = vmatprep.mubr.bf16.mxu0 0
        %524 = vmatmul.mubr.bf16.gmra.mrb[0].mxu0 %v468
        %v525 = vpop.f32.mrb[0].mxu0
        %v526 = vadd.f32 %v412, %v525
        %v527 = vpop.f32.mrb[0].mxu0
        %v528 = vpop.f32.mrb[0].mxu0
        %v529 = vadd.f32 %v412, %v528
        %v530 = vpop.f32.mrb[0].mxu0
        %531 = vmatprep.mubr.bf16.mxu0 0
        %532 = vmatmul.mubr.bf16.gmra.mrb[0].mxu0 %v471
        %v533 = vpop.f32.mrb[0].mxu0
        %v534 = vadd.f32 %v412, %v533
        %v535 = vpop.f32.mrb[0].mxu0
        %v536 = vpop.f32.mrb[0].mxu0
        %v537 = vadd.f32 %v412, %v536
        %v538 = vpop.f32.mrb[0].mxu0
        %539 = vmatprep.mubr.bf16.mxu0 0
        %540 = vmatmul.mubr.bf16.gmra.mrb[0].mxu0 %v474
        %v541 = vpop.f32.mrb[0].mxu0
        %v542 = vadd.f32 %v412, %v541
        %v543 = vpop.f32.mrb[0].mxu0
        %v544 = vpop.f32.mrb[0].mxu0
        %v545 = vadd.f32 %v412, %v544
        %v546 = vpop.f32.mrb[0].mxu0
        %547 = vmatprep.mubr.bf16.mxu0 0
        %548 = vmatmul.mubr.bf16.gmra.mrb[0].mxu0 %v477
        %v549 = vpop.f32.mrb[0].mxu0
        %v550 = vadd.f32 %v412, %v549
        %v551 = vpop.f32.mrb[0].mxu0
        %v552 = vpop.f32.mrb[0].mxu0
        %v553 = vadd.f32 %v412, %v552
        %v554 = vpop.f32.mrb[0].mxu0
        %555 = vmatprep.mubr.bf16.mxu0 0
        %556 = vmatmul.mubr.bf16.gmra.mrb[0].mxu0 %v480
        %v557 = vpop.f32.mrb[0].mxu0
        %v558 = vadd.f32 %v412, %v557
        %v559 = vpop.f32.mrb[0].mxu0
        %v560 = vpop.f32.mrb[0].mxu0
        %v561 = vadd.f32 %v412, %v560
        %v562 = vpop.f32.mrb[0].mxu0
        %563 = vmatprep.mubr.bf16.mxu0 0
        %564 = vmatmul.mubr.bf16.gmra.mrb[0].mxu0 %v483
        %v565 = vpop.f32.mrb[0].mxu0
        %v566 = vadd.f32 %v412, %v565
        %v567 = vpop.f32.mrb[0].mxu0
        %v568 = vpop.f32.mrb[0].mxu0
        %v569 = vadd.f32 %v412, %v568
        %v570 = vpop.f32.mrb[0].mxu0
        %571 = vmatprep.mubr.bf16.mxu0 0
        %572 = vmatmul.mubr.bf16.gmra.mrb[0].mxu0 %v486
        %v573 = vpop.f32.mrb[0].mxu0
        %v574 = vadd.f32 %v412, %v573
        %v575 = vpop.f32.mrb[0].mxu0
        %v576 = vpop.f32.mrb[0].mxu0
        %v577 = vadd.f32 %v412, %v576
        %v578 = vpop.f32.mrb[0].mxu0
        %579 = vmatprep.mubr.bf16.mxu0 0
        %580 = vmatmul.mubr.bf16.gmra.mrb[0].mxu0 %v489
        %v581 = vpop.f32.mrb[0].mxu0
        %v582 = vadd.f32 %v412, %v581
        %v583 = vpop.f32.mrb[0].mxu0
        %v584 = vpop.f32.mrb[0].mxu0
        %v585 = vadd.f32 %v412, %v584
        %v586 = vpop.f32.mrb[0].mxu0
        %587 = vdwg.mxu0
        %v588 = vmax.f32 %v526, 0.0
        %v589 = vmax.f32 %v529, 0.0
        %v590 = vmax.f32 %v534, 0.0
        %v591 = vmax.f32 %v537, 0.0
        %v592 = vmax.f32 %v542, 0.0
        %v593 = vmax.f32 %v545, 0.0
        %v594 = vmax.f32 %v550, 0.0
        %v595 = vmax.f32 %v553, 0.0
        %v596 = vmax.f32 %v558, 0.0
        %v597 = vmax.f32 %v561, 0.0
        %v598 = vmax.f32 %v566, 0.0
        %v599 = vmax.f32 %v569, 0.0
        %v600 = vmax.f32 %v574, 0.0
        %v601 = vmax.f32 %v577, 0.0
        %v602 = vmax.f32 %v582, 0.0
        %v603 = vmax.f32 %v585, 0.0
        %s604 = smul.u32 %s23, 64
        %v605 = vlaneseq
        %v606 = vshrl.u32 %v605, 7
        %v607 = vadd.s32 %v606, 8
        %v608 = vadd.s32 %v606, 16
        %v609 = vadd.s32 %v606, 24
        %v610 = vadd.s32 %v606, 32
        %v611 = vadd.s32 %v606, 40
        %v612 = vadd.s32 %v606, 48
        %v613 = vadd.s32 %v606, 56
        %v614 = vstv %s604
        %v615 = vadd.s32 %v614, %v606
        %v616 = vadd.s32 %v614, %v607
        %v617 = vadd.s32 %v614, %v608
        %v618 = vadd.s32 %v614, %v609
        %v619 = vadd.s32 %v614, %v610
        %v620 = vadd.s32 %v614, %v611
        %v621 = vadd.s32 %v614, %v612
        %v622 = vadd.s32 %v614, %v613
        %vm623 = vcmp.lt.s32.totalorder %v615, 225
        %vm624 = vcmp.lt.s32.totalorder %v616, 225
        %vm625 = vcmp.lt.s32.totalorder %v617, 225
        %vm626 = vcmp.lt.s32.totalorder %v618, 225
        %vm627 = vcmp.lt.s32.totalorder %v619, 225
        %vm628 = vcmp.lt.s32.totalorder %v620, 225
        %vm629 = vcmp.lt.s32.totalorder %v621, 225
        %vm630 = vcmp.lt.s32.totalorder %v622, 225
        %v631 = vsel %vm623, 1, 0
        %v632 = vsel %vm624, 1, 0
        %v633 = vsel %vm625, 1, 0
        %v634 = vsel %vm626, 1, 0
        %v635 = vsel %vm627, 1, 0
        %v636 = vsel %vm628, 1, 0
        %v637 = vsel %vm629, 1, 0
        %v638 = vsel %vm630, 1, 0
        %vm639 = vcmp.eq.s32.totalorder %v631, 1
        %vm640 = vcmp.eq.s32.totalorder %v632, 1
        %vm641 = vcmp.eq.s32.totalorder %v633, 1
        %vm642 = vcmp.eq.s32.totalorder %v634, 1
        %vm643 = vcmp.eq.s32.totalorder %v635, 1
        %vm644 = vcmp.eq.s32.totalorder %v636, 1
        %vm645 = vcmp.eq.s32.totalorder %v637, 1
        %vm646 = vcmp.eq.s32.totalorder %v638, 1
        %v647 = vsel %vm639, %v588, 0.0
        %v648 = vsel %vm640, %v589, 0.0
        %v649 = vsel %vm641, %v590, 0.0
        %v650 = vsel %vm642, %v591, 0.0
        %v651 = vsel %vm643, %v592, 0.0
        %v652 = vsel %vm644, %v593, 0.0
        %v653 = vsel %vm645, %v594, 0.0
        %v654 = vsel %vm646, %v595, 0.0
        %v655 = vsel %vm639, %v596, 0.0
        %v656 = vsel %vm640, %v597, 0.0
        %v657 = vsel %vm641, %v598, 0.0
        %v658 = vsel %vm642, %v599, 0.0
        %v659 = vsel %vm643, %v600, 0.0
        %v660 = vsel %vm644, %v601, 0.0
        %v661 = vsel %vm645, %v602, 0.0
        %v662 = vsel %vm646, %v603, 0.0
        %v663 = vld [vmem:[#allocation2] sm:$0x3]
        %v664 = vadd.f32 %v647, %v648
        %v665 = vadd.f32 %v664, %v649
        %v666 = vadd.f32 %v665, %v650
        %v667 = vadd.f32 %v666, %v651
        %v668 = vadd.f32 %v667, %v652
        %v669 = vadd.f32 %v668, %v653
        %v670 = vadd.f32 %v669, %v654
        %v671 = vrot.slane %v670, 4
        %v672 = vadd.f32 %v670, %v671
        %v673 = vrot.slane %v672, 2
        %v674 = vadd.f32 %v672, %v673
        %v675 = vrot.slane %v674, 1
        %v676 = vadd.f32 %v674, %v675
        %v677 = vadd.f32 %v655, %v656
        %v678 = vadd.f32 %v677, %v657
        %v679 = vadd.f32 %v678, %v658
        %v680 = vadd.f32 %v679, %v659
        %v681 = vadd.f32 %v680, %v660
        %v682 = vadd.f32 %v681, %v661
        %v683 = vadd.f32 %v682, %v662
        %v684 = vrot.slane %v683, 4
        %v685 = vadd.f32 %v683, %v684
        %v686 = vrot.slane %v685, 2
        %v687 = vadd.f32 %v685, %v686
        %v688 = vrot.slane %v687, 1
        %v689 = vadd.f32 %v687, %v688
        %vm692 = vcmask 1041409
        %v693 = vsel %vm692, %v689, %v676
        %v695 = vadd.f32 %v663, %v693
        %696 = vst [vmem:[#allocation2] sm:$0x3] %v695
        %p697 = scmp.eq.s32.totalorder %s23, 3
        // Predicated region
        $region90: #{tpu_custom_call.1} parent=80 // pred_check
          %p698 = pneg %p697
        $region91: #{tpu_custom_call.1} parent=80 // pred_check_branch
          %700 = sbr.rel (%p698) target = $region93
        $region92: #{tpu_custom_call.1} parent=80 // pred_region
          %v701 = vld [vmem:[#allocation2] sm:$0x3]
          %v702 = vmul.f32 %v701, 0.0044444446
          %v703 = vld [vmem:[%s3] sm:$0xff]
          %v704 = vld [vmem:[%s3 + $0x8] sm:$0xff]
          %v705 = vld [vmem:[%s3 + $0x10] sm:$0xff]
          %v706 = vld [vmem:[%s3 + $0x18] sm:$0xff]
          %v707 = vld [vmem:[%s3 + $0x20] sm:$0xff]
          %v708 = vld [vmem:[%s3 + $0x28] sm:$0xff]
          %v709 = vld [vmem:[%s3 + $0x30] sm:$0xff]
          %v710 = vld [vmem:[%s3 + $0x38] sm:$0xff]
          %v711 = vld [vmem:[%s3 + $0x40] sm:$0xff]
          %v712 = vld [vmem:[%s3 + $0x48] sm:$0xff]
          %v713 = vld [vmem:[%s3 + $0x50] sm:$0xff]
          %v714 = vld [vmem:[%s3 + $0x58] sm:$0xff]
          %v715 = vld [vmem:[%s3 + $0x60] sm:$0xff]
          %v716 = vld [vmem:[%s3 + $0x68] sm:$0xff]
          %v717 = vld [vmem:[%s3 + $0x70] sm:$0xff]
          %v718 = vld [vmem:[%s3 + $0x78] sm:$0xff]
          %v719 = vld [vmem:[%s4] sm:$0x1]
          %v721 = vlaneseq
          %v722 = vshrl.u32 %v721, 7
          %v723 = vsub.s32 0, %v722
          %v724 = vrot.slane %v719, %v723
          %726 = vmatprep.subr.mxu0 0.0
          %727 = vmatpush1.msra.mxu0 %v703
          %728 = vmatprep.subr.mxu0 0.0
          %729 = vmatpush1.msra.mxu0 %v704
          %730 = vmatprep.subr.mxu0 0.0
          %731 = vmatpush1.msra.mxu0 %v705
          %732 = vmatprep.subr.mxu0 0.0
          %733 = vmatpush1.msra.mxu0 %v706
          %734 = vmatprep.subr.mxu0 0.0
          %735 = vmatpush1.msra.mxu0 %v707
          %736 = vmatprep.subr.mxu0 0.0
          %737 = vmatpush1.msra.mxu0 %v708
          %738 = vmatprep.subr.mxu0 0.0
          %739 = vmatpush1.msra.mxu0 %v709
          %740 = vmatprep.subr.mxu0 0.0
          %741 = vmatpush1.msra.mxu0 %v710
          %742 = vmatprep.subr.mxu0 0.0
          %743 = vmatpush1.msra.mxu0 %v711
          %744 = vmatprep.subr.mxu0 0.0
          %745 = vmatpush1.msra.mxu0 %v712
          %746 = vmatprep.subr.mxu0 0.0
          %747 = vmatpush1.msra.mxu0 %v713
          %748 = vmatprep.subr.mxu0 0.0
          %749 = vmatpush1.msra.mxu0 %v714
          %750 = vmatprep.subr.mxu0 0.0
          %751 = vmatpush1.msra.mxu0 %v715
          %752 = vmatprep.subr.mxu0 0.0
          %753 = vmatpush1.msra.mxu0 %v716
          %754 = vmatprep.subr.mxu0 0.0
          %755 = vmatpush1.msra.mxu0 %v717
          %756 = vmatprep.subr.mxu0 0.0
          %757 = vmatpush1.msra.mxu0 %v718
          %758 = vmatprep.subr.mxu0 0.0
          %759 = vmatpush1.msra.mxu0 0.0
          %760 = vmatprep.subr.mxu0 0.0
          %761 = vmatpush1.msra.mxu0 0.0
          %762 = vmatprep.subr.mxu0 0.0
          %763 = vmatpush1.msra.mxu0 0.0
          %764 = vmatprep.subr.mxu0 0.0
          %765 = vmatpush1.msra.mxu0 0.0
          %766 = vmatprep.subr.mxu0 0.0
          %767 = vmatpush1.msra.mxu0 0.0
          %768 = vmatprep.subr.mxu0 0.0
          %769 = vmatpush1.msra.mxu0 0.0
          %770 = vmatprep.subr.mxu0 0.0
          %771 = vmatpush1.msra.mxu0 0.0
          %772 = vmatprep.subr.mxu0 0.0
          %773 = vmatpush1.msra.mxu0 0.0
          %774 = vmatprep.subr.mxu0 0.0
          %775 = vmatpush1.msra.mxu0 0.0
          %776 = vmatprep.subr.mxu0 0.0
          %777 = vmatpush1.msra.mxu0 0.0
          %778 = vmatprep.subr.mxu0 0.0
          %779 = vmatpush1.msra.mxu0 0.0
          %780 = vmatprep.subr.mxu0 0.0
          %781 = vmatpush1.msra.mxu0 0.0
          %782 = vmatprep.subr.mxu0 0.0
          %783 = vmatpush1.msra.mxu0 0.0
          %784 = vmatprep.subr.mxu0 0.0
          %785 = vmatpush1.msra.mxu0 0.0
          %786 = vmatprep.subr.mxu0 0.0
          %787 = vmatpush1.msra.mxu0 0.0
          %788 = vmatprep.subr.mxu0 0.0
          %789 = vmatpush1.msra.mxu0 0.0
          %790 = vmatprep.mubr.f32.mxu0 0.0
          %791 = vmatmul.mubr.f32.gmra.mrb[0].mxu0 %v702
          %v792 = vpop.f32.mrb[0].mxu0
          %v793 = vadd.f32 %v724, %v792
          %v794 = vpop.f32.mrb[0].mxu0
          %795 = vdwg.mxu0
          %v796 = vmax.f32 %v793, 0.0
          %v797 = vld [vmem:[%s380] sm:$0x3]
          %vm798 = vcmp.lt.f32.partialorder %v797, 0.5
          %v799 = vmul.f32 %v796, 2.0
          %v800 = vsel %vm798, %v799, 0.0
          %801 = vst [vmem:[#allocation4] sm:$0x3] %v800
        $region93: #{tpu_custom_call.1} parent=80 // pred_fallthru
          _
        // Predicated region
        $region94: #{tpu_custom_call.1} parent=80 // pred_check
          %p802 = pneg %p186
        $region95: #{tpu_custom_call.1} parent=80 // pred_check_branch
          %804 = sbr.rel (%p802) target = $region97
        $region96: #{tpu_custom_call.1} parent=80 // pred_region
          %s806 = ssub.s32 32, 32
          %807 = vsyncadd [#allocation5], %s806
          %s808 = smul.addr %s22, 32
          %s809 = scalar_lea.hbm %s6, %s808
          %s811 = sshll.u32 [#allocation4], 4
          %s812 = int_to_ptr.vmem [resolvable:$true] %s811
          %814 = dma.vmem_to_hbm [thread:$0]  %s812, 32, %s809, [#allocation5]
        $region97: #{tpu_custom_call.1} parent=80 // pred_fallthru
          _
        // Predicated region
        $region98: #{tpu_custom_call.1} parent=80 // pred_check
          %p815 = pneg %p186
        $region99: #{tpu_custom_call.1} parent=80 // pred_check_branch
          %817 = sbr.rel (%p815) target = $region101
        $region100: #{tpu_custom_call.1} parent=80 // pred_region
          %818 = dma.done [#allocation5], 32
        $region101: #{tpu_custom_call.1} parent=80 // pred_fallthru
          _
      $region81: #{tpu_custom_call.1} parent=5 // pred_fallthru
        _
      %p819 = scmp.le.s32.totalorder 2, %s13
      // Predicated region
      $region102: #{tpu_custom_call.1} parent=5 // pred_check
        %p820 = pneg %p819
      $region103: #{tpu_custom_call.1} parent=5 // pred_check_branch
        %822 = sbr.rel (%p820) target = $region105
      $region104: #{tpu_custom_call.1} parent=5 // pred_region
        %s823 = ssub.s32 %s13, 2
      $region105: #{tpu_custom_call.1} parent=5 // pred_fallthru
        _
    $region6: #{tpu_custom_call.1} parent=1 // loop_footer
      %s17 = sadd.s32 1, %s13
    $region7: #{tpu_custom_call.1} parent=1 // loop_footer_branch
      %12 = sbr.rel target = $region3
    $region8: #{tpu_custom_call.1} parent=1 // loop_exit
      _
    %824 = vsyncpa [#allocation5], 1
    %s825 = scalar_lea.sflag [#allocation5], 1
    %826 = vsyncpa %s825, 1

</llo_original>
